<compile_context>
chip_gen: v7x
topology: tpu7x:2x2x1
jax: 0.10.0
libtpu: 0.0.40
codegen_flags: <defaults>
</compile_context>

<pallas_src>
import jax
import jax.numpy as jnp
from jax.experimental import pallas as pl
from jax.experimental.pallas import tpu as pltpu

BN_EPS = 1e-5


def _round_up(x, m):
    return (x + m - 1) // m * m


def _vmem_capacity_bytes():
    try:
        return int(pltpu.get_tpu_info().vmem_capacity_bytes)
    except Exception:
        return 64 * 1024 * 1024  # conservative floor (v7x per-core VMEM)


def _is_v7x():
    try:
        return "v7" in jax.devices()[0].device_kind.lower()
    except Exception:
        return False


# ---------------------------------------------------------------------------
# Kernel (feature-major: every operand has batch on the lane dimension)
# ---------------------------------------------------------------------------
def _make_kernel(H, E, ER_PAD):
    """Closure over static feature sizes (bias-pack slice offsets)."""

    def kernel(x_ref, w1_ref, w2_ref, we1_ref, we2_ref, bias_ref, out_ref):
        wdt = w1_ref.dtype
        # Keep MXU operands in the weight dtype (bf16 path stays bf16 — no f32
        # promotion); accumulation is f32 via preferred_element_type.
        xT = x_ref[...].astype(wdt)                       # [F, TB]

        bias = bias_ref[...]                              # [Wmax, 4] f32, one tiny load
        b1 = bias[0:H, 0:1]                                # column vectors broadcast
        b2 = bias[0:E, 1:2]                                #   along the lane (batch) dim
        be1 = bias[0:ER_PAD, 2:3]
        be2 = bias[0:E, 3:4]

        # fc[0] Linear(F->2F) with eval BatchNorm1d folded in; fc[2] ReLU;
        # fc[3] Dropout(p=0.3) -> identity in eval.
        h = jnp.dot(w1_ref[...], xT, preferred_element_type=jnp.float32) + b1
        h = jnp.maximum(h, 0.0).astype(wdt)                # [H, TB]

        # fc[4] Linear(2F -> E)
        e = jnp.dot(w2_ref[...], h, preferred_element_type=jnp.float32) + b2

        # excitation[0..1] Linear(E -> Er, zero-padded to ER_PAD) + ReLU
        z = jnp.dot(we1_ref[...], e.astype(wdt),
                    preferred_element_type=jnp.float32) + be1
        z = jnp.maximum(z, 0.0).astype(wdt)                # [ER_PAD, TB]

        # excitation[2..3] Linear(Er -> E) + Sigmoid
        s = jnp.dot(we2_ref[...], z, preferred_element_type=jnp.float32) + be2
        out_ref[...] = jax.nn.sigmoid(s).astype(out_ref.dtype)

    return kernel


# ---------------------------------------------------------------------------
# One-time parameter preparation (constant folds outside the kernel)
# ---------------------------------------------------------------------------
def prepare_se_params(p, *, er_pad=None, weight_dtype=jnp.bfloat16):
    """Fold BN into fc[0], transpose weights to feature-major, pack biases,
    pad the Er bottleneck to one sublane tile.

    weight_dtype=bf16 (default) halves weight bytes and hits the bf16 MXU path
    (f32 accumulate kept in-kernel); pass jnp.float32 for bit-tight results.
    """
    scale = p["gamma"] * jax.lax.rsqrt(p["var"] + BN_EPS)     # [1, H]
    w1f = p["w1"] * scale                                     # [F, H]
    b1f = (p["b1"] - p["mu"]) * scale + p["beta"]             # [1, H]

    F, H = w1f.shape
    _, E = p["w2"].shape
    _, Er = p["we1"].shape
    ER_PAD = _round_up(max(Er, 8), 8) if er_pad is None else max(er_pad, Er)

    # Feature-major weights: y^T = W^T @ x^T.
    w1t = w1f.T                                               # [H, F]
    w2t = p["w2"].T                                           # [E, H]
    we1t = jnp.zeros((ER_PAD, E), jnp.float32).at[:Er, :].set(p["we1"].T)
    we2t = jnp.zeros((E, ER_PAD), jnp.float32).at[:, :Er].set(p["we2"].T)

    Wmax = _round_up(max(H, E, ER_PAD), 8)
    bias = jnp.zeros((Wmax, 4), jnp.float32)
    bias = bias.at[:H, 0].set(b1f[0])
    bias = bias.at[:E, 1].set(p["b2"][0])
    bias = bias.at[:Er, 2].set(p["be1"][0])
    bias = bias.at[:E, 3].set(p["be2"][0])

    return dict(
        w1t=w1t.astype(weight_dtype),
        w2t=w2t.astype(weight_dtype),
        we1t=we1t.astype(weight_dtype),
        we2t=we2t.astype(weight_dtype),
        bias=bias,                        # biases / VPU math stay f32
        dims=(F, H, E, ER_PAD),
    )


# ---------------------------------------------------------------------------
# Wrappers
# ---------------------------------------------------------------------------
def _auto_batch_tile(B, F, E, act_dtype, weights):
    """0 => grid-less (fits VMEM); otherwise a lane-aligned batch tile."""
    itemsize = jnp.dtype(act_dtype).itemsize
    lanes = _round_up(max(B, 128), 128)
    act_bytes = (_round_up(F, 8) + _round_up(E, 8)) * lanes * itemsize
    w_bytes = sum(_round_up(w.shape[0], 8) * _round_up(w.shape[1], 128)
                  * jnp.dtype(w.dtype).itemsize for w in weights)
    # Per-generation cutoff: v5e/v6e have 128 MiB VMEM, v7x only 64 MiB.
    if act_bytes + w_bytes <= _vmem_capacity_bytes() // 8:
        return 0
    # Large enough to amortize the ~0.35 us per-grid-step overhead; a multiple
    # of 256 fills the 256-wide MXU N dimension on v6e/v7x (128 on v5e).
    return 512


def se_block_t(xT, fp, *, batch_tile=None, core_parallel=None):
    """SEBlock forward on feature-major input: xT [feat_dim, B] -> [emb_dim, B]."""
    F, H, E, ER_PAD = fp["dims"]
    assert xT.shape[0] == F, (xT.shape, F)
    B = xT.shape[1]
    kernel = _make_kernel(H, E, ER_PAD)
    weights = (fp["w1t"], fp["w2t"], fp["we1t"], fp["we2t"], fp["bias"])

    if batch_tile is None:
        batch_tile = _auto_batch_tile(B, F, E, xT.dtype, weights)

    if batch_tile == 0 or batch_tile >= B:
        # Grid-less: whole problem resident in VMEM (small-B, overhead-bound).
        vmem = pl.BlockSpec(memory_space=pltpu.MemorySpace.VMEM)
        return pl.pallas_call(
            kernel,
            out_shape=jax.ShapeDtypeStruct((E, B), xT.dtype),
            in_specs=[vmem] * (1 + len(weights)),
            out_specs=vmem,
            compiler_params=pltpu.CompilerParams(
                vmem_limit_bytes=int(_vmem_capacity_bytes() // 2)),
        )(xT, *weights)

    TB = int(batch_tile)
    assert TB % 128 == 0, "batch_tile is the lane extent: must be a multiple of 128"
    B_pad = _round_up(B, TB)
    if B_pad != B:
        xT = jnp.pad(xT, ((0, 0), (0, B_pad - B)))   # padded cols sliced off below
    n_tiles = B_pad // TB

    if core_parallel is None:
        # Plain "parallel" does not split the grid across v7x's two TensorCores.
        core_parallel = _is_v7x() and n_tiles >= 2 and n_tiles % 2 == 0
    sem = pltpu.CORE_PARALLEL if core_parallel else pltpu.PARALLEL

    def resident(a):
        nd = a.ndim
        # Constant index_map -> fetched once and kept VMEM-resident by the
        # pipeliner (weights total < 50 KB, so no need for pl.Buffered tuning).
        return pl.BlockSpec(a.shape, lambda *_: (0,) * nd)

    outT = pl.pallas_call(
        kernel,
        out_shape=jax.ShapeDtypeStruct((E, B_pad), xT.dtype),
        grid_spec=pltpu.PrefetchScalarGridSpec(
            num_scalar_prefetch=0,
            grid=(n_tiles,),
            in_specs=[pl.BlockSpec((F, TB), lambda i: (0, i))]
                     + [resident(a) for a in weights],
            out_specs=pl.BlockSpec((E, TB), lambda i: (0, i)),
        ),
        compiler_params=pltpu.CompilerParams(dimension_semantics=(sem,)),
    )(xT, *weights)
    return outT[:, :B] if B_pad != B else outT


def se_block(x, fp, *, batch_tile=None, core_parallel=None):
    """SEBlock forward on nn.Linear layout: x [B, feat_dim] -> [B, emb_dim].

    The kernel is feature-major (batch on lanes) so stores are lane-dense and
    the batch fills the MXU N axis; the transposes here are layout plumbing.
    Callers that already hold feature-major data should use se_block_t.
    """
    outT = se_block_t(x.T, fp, batch_tile=batch_tile, core_parallel=core_parallel)
    return outT.T


# ---------------------------------------------------------------------------
# Pure-JAX reference (uses the raw, un-folded parameters)
# ---------------------------------------------------------------------------
def se_block_ref(x, p):
    h = x @ p["w1"] + p["b1"]
    h = (h - p["mu"]) * jax.lax.rsqrt(p["var"] + BN_EPS) * p["gamma"] + p["beta"]
    h = jnp.maximum(h, 0.0)
    e = h @ p["w2"] + p["b2"]
    z = jnp.maximum(e @ p["we1"] + p["be1"], 0.0)
    return jax.nn.sigmoid(z @ p["we2"] + p["be2"])


if __name__ == "__main__":
    # Shapes consistent with the module: feat_dim=24, emb_dim=24, reduction_ratio=12.
    B, F, E, R = 8, 24, 24, 12
    H = 2 * F          # fc hidden = feat_dim * 2
    Er = E // R        # excitation bottleneck = emb_dim // reduction_ratio = 2

    key = jax.random.PRNGKey(0)
    ks = jax.random.split(key, 16)

    def init(k, shape, scale=0.1):
        return (scale * jax.random.normal(k, shape)).astype(jnp.float32)

    raw_params = dict(
        w1=init(ks[0], (F, H)), b1=init(ks[1], (1, H)),
        gamma=1.0 + init(ks[2], (1, H)), beta=init(ks[3], (1, H)),
        mu=init(ks[4], (1, H)), var=1.0 + jnp.abs(init(ks[5], (1, H))),
        w2=init(ks[6], (H, E)), b2=init(ks[7], (1, E)),
        we1=init(ks[8], (E, Er)), be1=init(ks[9], (1, Er)),
        we2=init(ks[10], (Er, E)), be2=init(ks[11], (1, E)),
    )

    # --- 1) f32 weights, small batch -> grid-less path (tight tolerance) ----
    fp32 = prepare_se_params(raw_params, weight_dtype=jnp.float32)
    x = jax.random.normal(ks[12], (B, F), jnp.float32)
    out = jax.block_until_ready(se_block(x, fp32))
    ref = se_block_ref(x, raw_params)
    assert out.shape == (B, E), out.shape
    assert jnp.allclose(out, ref, atol=1e-5, rtol=1e-5), "mismatch (grid-less f32)"

    # --- 2) bf16 weights + bf16 activations, large batch -> tiled path ------
    fpbf = prepare_se_params(raw_params)          # bf16 weights (default)
    B2, TB = 1024, 512
    x2 = jax.random.normal(ks[13], (B2, F), jnp.float32).astype(jnp.bfloat16)
    out2 = jax.block_until_ready(se_block(x2, fpbf, batch_tile=TB))
    ref2 = se_block_ref(x2.astype(jnp.float32), raw_params)
    assert out2.shape == (B2, E), out2.shape
    assert jnp.allclose(out2.astype(jnp.float32), ref2, atol=3e-2), "mismatch (tiled bf16)"

    # --- 3) ragged batch (zero-pad + slice) and auto tile selection ---------
    B3 = 600
    x3 = jax.random.normal(ks[14], (B3, F), jnp.float32).astype(jnp.bfloat16)
    out3 = jax.block_until_ready(se_block(x3, fpbf, batch_tile=256))
    ref3 = se_block_ref(x3.astype(jnp.float32), raw_params)
    assert out3.shape == (B3, E), out3.shape
    assert jnp.allclose(out3.astype(jnp.float32), ref3, atol=3e-2), "mismatch (padded tiled)"

    out4 = jax.block_until_ready(se_block(x3, fpbf))   # auto: grid-less at this size
    assert jnp.allclose(out4.astype(jnp.float32), ref3, atol=3e-2), "mismatch (auto path)"

    print("KERNEL_OK")
</pallas_src>

<mosaic_0001>
module attributes {stable_mosaic.version = 11 : i64} {
  func.func @kernel(%arg0: memref<24x8xf32, #tpu.memory_space<vmem>>, %arg1: memref<48x24xf32, #tpu.memory_space<vmem>>, %arg2: memref<24x48xf32, #tpu.memory_space<vmem>>, %arg3: memref<8x24xf32, #tpu.memory_space<vmem>>, %arg4: memref<24x8xf32, #tpu.memory_space<vmem>>, %arg5: memref<48x4xf32, #tpu.memory_space<vmem>>, %arg6: memref<24x8xf32, #tpu.memory_space<vmem>>) attributes {dimension_semantics = [], scalar_prefetch = 0 : i64, scratch_operands = 0 : i64, tpu.core_type = #tpu.core_type<tc>} {
    %c0 = arith.constant 0 : index
    %c0_0 = arith.constant 0 : index
    %0 = vector.load %arg0[%c0, %c0_0] : memref<24x8xf32, #tpu.memory_space<vmem>>, vector<24x8xf32>
    %c0_1 = arith.constant 0 : index
    %c0_2 = arith.constant 0 : index
    %1 = vector.load %arg5[%c0_1, %c0_2] : memref<48x4xf32, #tpu.memory_space<vmem>>, vector<48x4xf32>
    %2 = vector.extract_strided_slice %1 {offsets = [0, 0], sizes = [48, 1], strides = [1, 1]} : vector<48x4xf32> to vector<48x1xf32>
    %3 = vector.extract_strided_slice %1 {offsets = [0, 1], sizes = [24, 1], strides = [1, 1]} : vector<48x4xf32> to vector<24x1xf32>
    %4 = vector.extract_strided_slice %1 {offsets = [0, 2], sizes = [8, 1], strides = [1, 1]} : vector<48x4xf32> to vector<8x1xf32>
    %5 = vector.extract_strided_slice %1 {offsets = [0, 3], sizes = [24, 1], strides = [1, 1]} : vector<48x4xf32> to vector<24x1xf32>
    %c0_3 = arith.constant 0 : index
    %c0_4 = arith.constant 0 : index
    %6 = vector.load %arg1[%c0_3, %c0_4] : memref<48x24xf32, #tpu.memory_space<vmem>>, vector<48x24xf32>
    %cst = arith.constant dense<0.000000e+00> : vector<48x8xf32>
    %7 = tpu.matmul %6, %0, %cst {dimension_numbers = #tpu.dot_dimension_numbers<[1], [0], [0], [1], [0, 0, 1, 1], [], []>} : vector<48x24xf32>, vector<24x8xf32>, vector<48x8xf32> -> vector<48x8xf32>
    %8 = vector.broadcast %2 : vector<48x1xf32> to vector<48x8xf32>
    %9 = arith.addf %7, %8 : vector<48x8xf32>
    %cst_5 = arith.constant 0.000000e+00 : f32
    %10 = vector.broadcast %cst_5 : f32 to vector<48x8xf32>
    %11 = arith.maximumf %9, %10 : vector<48x8xf32>
    %c0_6 = arith.constant 0 : index
    %c0_7 = arith.constant 0 : index
    %12 = vector.load %arg2[%c0_6, %c0_7] : memref<24x48xf32, #tpu.memory_space<vmem>>, vector<24x48xf32>
    %cst_8 = arith.constant dense<0.000000e+00> : vector<24x8xf32>
    %13 = tpu.matmul %12, %11, %cst_8 {dimension_numbers = #tpu.dot_dimension_numbers<[1], [0], [0], [1], [0, 0, 1, 1], [], []>} : vector<24x48xf32>, vector<48x8xf32>, vector<24x8xf32> -> vector<24x8xf32>
    %14 = vector.broadcast %3 : vector<24x1xf32> to vector<24x8xf32>
    %15 = arith.addf %13, %14 : vector<24x8xf32>
    %c0_9 = arith.constant 0 : index
    %c0_10 = arith.constant 0 : index
    %16 = vector.load %arg3[%c0_9, %c0_10] : memref<8x24xf32, #tpu.memory_space<vmem>>, vector<8x24xf32>
    %cst_11 = arith.constant dense<0.000000e+00> : vector<8x8xf32>
    %17 = tpu.matmul %16, %15, %cst_11 {dimension_numbers = #tpu.dot_dimension_numbers<[1], [0], [0], [1], [0, 0, 1, 1], [], []>} : vector<8x24xf32>, vector<24x8xf32>, vector<8x8xf32> -> vector<8x8xf32>
    %18 = vector.broadcast %4 : vector<8x1xf32> to vector<8x8xf32>
    %19 = arith.addf %17, %18 : vector<8x8xf32>
    %cst_12 = arith.constant 0.000000e+00 : f32
    %20 = vector.broadcast %cst_12 : f32 to vector<8x8xf32>
    %21 = arith.maximumf %19, %20 : vector<8x8xf32>
    %c0_13 = arith.constant 0 : index
    %c0_14 = arith.constant 0 : index
    %22 = vector.load %arg4[%c0_13, %c0_14] : memref<24x8xf32, #tpu.memory_space<vmem>>, vector<24x8xf32>
    %cst_15 = arith.constant dense<0.000000e+00> : vector<24x8xf32>
    %23 = tpu.matmul %22, %21, %cst_15 {dimension_numbers = #tpu.dot_dimension_numbers<[1], [0], [0], [1], [0, 0, 1, 1], [], []>} : vector<24x8xf32>, vector<8x8xf32>, vector<24x8xf32> -> vector<24x8xf32>
    %24 = vector.broadcast %5 : vector<24x1xf32> to vector<24x8xf32>
    %25 = arith.addf %23, %24 : vector<24x8xf32>
    %26 = arith.negf %25 : vector<24x8xf32>
    %27 = math.exp %26 : vector<24x8xf32>
    %cst_16 = arith.constant 1.000000e+00 : f32
    %28 = vector.broadcast %cst_16 : f32 to vector<24x8xf32>
    %29 = arith.addf %28, %27 : vector<24x8xf32>
    %30 = arith.divf %28, %29 : vector<24x8xf32>
    %c0_17 = arith.constant 0 : index
    %c0_18 = arith.constant 0 : index
    %31 = vector.load %arg6[%c0_17, %c0_18] : memref<24x8xf32, #tpu.memory_space<vmem>>, vector<24x8xf32>
    tpu.vector_store %arg6[%c0_17, %c0_18], %30 {strides = array<i32>} : memref<24x8xf32, #tpu.memory_space<vmem>>, vector<24x8xf32>,
    return
  }
}

</mosaic_0001>

<llo_original>
// kernel: tpu_custom_call.1
$region0: #{tpu_custom_call.1}
  #allocation0 [shape = 'u32[]', space=smem, size = 0x4, offset = 0x4, fixed_abs, tag = 'smem constant byte address 0x4 - core index']
  #allocation1 [shape = 'u32[144,128]{1,0:T(1,128)}', space=vmem, size = 0x12000, scoped, tag = 'internal scratch']
  %s0 = inlined_call_operand.vmem [shape: f32[24,8], index: 0, kind: input, shape index: {}]
  %s1 = inlined_call_operand.vmem [shape: f32[48,24], index: 1, kind: input, shape index: {}]
  %s2 = inlined_call_operand.vmem [shape: f32[24,48], index: 2, kind: input, shape index: {}]
  %s3 = inlined_call_operand.vmem [shape: f32[8,24], index: 3, kind: input, shape index: {}]
  %s4 = inlined_call_operand.vmem [shape: f32[24,8], index: 4, kind: input, shape index: {}]
  %s5 = inlined_call_operand.vmem [shape: f32[48,4], index: 5, kind: input, shape index: {}]
  %s6 = inlined_call_operand.vmem [shape: f32[24,8], index: 6, kind: output, shape index: {}]
  %s7 = sld [smem:[#allocation0]]
  $region34: #{tpu_custom_call.1} parent=0
    _
  %s9 = ssub.s32 1, %s7
  %s10 = scalar_select 0, %s9, %s7
  // Predicated region
  $region2: #{tpu_custom_call.1} parent=0 // pred_check
    _
  $region3: #{tpu_custom_call.1} parent=0 // pred_check_branch
    %12 = sbr.rel (0) target = $region5
  $region4: #{tpu_custom_call.1} parent=0 // pred_region
    _
  $region5: #{tpu_custom_call.1} parent=0 // pred_fallthru
    _
  // Predicated region
  $region6: #{tpu_custom_call.1} parent=0 // pred_check
    _
  $region7: #{tpu_custom_call.1} parent=0 // pred_check_branch
    %14 = sbr.rel (0) target = $region9
  $region8: #{tpu_custom_call.1} parent=0 // pred_region
    _
  $region9: #{tpu_custom_call.1} parent=0 // pred_fallthru
    _
  // Predicated region
  $region10: #{tpu_custom_call.1} parent=0 // pred_check
    _
  $region11: #{tpu_custom_call.1} parent=0 // pred_check_branch
    %16 = sbr.rel (0) target = $region13
  $region12: #{tpu_custom_call.1} parent=0 // pred_region
    _
  $region13: #{tpu_custom_call.1} parent=0 // pred_fallthru
    _
  // Predicated region
  $region14: #{tpu_custom_call.1} parent=0 // pred_check
    _
  $region15: #{tpu_custom_call.1} parent=0 // pred_check_branch
    %18 = sbr.rel (0) target = $region17
  $region16: #{tpu_custom_call.1} parent=0 // pred_region
    _
  $region17: #{tpu_custom_call.1} parent=0 // pred_fallthru
    _
  // Predicated region
  $region18: #{tpu_custom_call.1} parent=0 // pred_check
    _
  $region19: #{tpu_custom_call.1} parent=0 // pred_check_branch
    %20 = sbr.rel (0) target = $region21
  $region20: #{tpu_custom_call.1} parent=0 // pred_region
    _
  $region21: #{tpu_custom_call.1} parent=0 // pred_fallthru
    _
  // Predicated region
  $region22: #{tpu_custom_call.1} parent=0 // pred_check
    _
  $region23: #{tpu_custom_call.1} parent=0 // pred_check_branch
    %22 = sbr.rel (0) target = $region25
  $region24: #{tpu_custom_call.1} parent=0 // pred_region
    _
  $region25: #{tpu_custom_call.1} parent=0 // pred_fallthru
    _
  %v23 = vld [vmem:[%s0] sm:$0xff]
  %v24 = vld [vmem:[%s0 + $0x8] sm:$0xff]
  %v25 = vld [vmem:[%s0 + $0x10] sm:$0xff]
  %v26 = vld [vmem:[%s5] sm:$0xff]
  %v27 = vld [vmem:[%s5 + $0x8] sm:$0xff]
  %v28 = vld [vmem:[%s5 + $0x10] sm:$0xff]
  %v29 = vld [vmem:[%s5 + $0x18] sm:$0xff]
  %v30 = vld [vmem:[%s5 + $0x20] sm:$0xff]
  %v31 = vld [vmem:[%s5 + $0x28] sm:$0xff]
  %v32 = vld [vmem:[%s1] sm:$0xff]
  %v33 = vld [vmem:[%s1 + $0x8] sm:$0xff]
  %v34 = vld [vmem:[%s1 + $0x10] sm:$0xff]
  %v35 = vld [vmem:[%s1 + $0x18] sm:$0xff]
  %v36 = vld [vmem:[%s1 + $0x20] sm:$0xff]
  %v37 = vld [vmem:[%s1 + $0x28] sm:$0xff]
  %39 = vset.pattern.permute.xlu0 0
  %40 = vperm.xlu0 %39, %v26
  %v41 = vpop.permute.xlu0 %40
  %44 = vset.pattern.permute.xlu0 0
  %45 = vperm.xlu0 %44, %v27
  %v46 = vpop.permute.xlu0 %45
  %49 = vset.pattern.permute.xlu0 0
  %50 = vperm.xlu0 %49, %v28
  %v51 = vpop.permute.xlu0 %50
  %54 = vset.pattern.permute.xlu0 0
  %55 = vperm.xlu0 %54, %v29
  %v56 = vpop.permute.xlu0 %55
  %59 = vset.pattern.permute.xlu0 0
  %60 = vperm.xlu0 %59, %v30
  %v61 = vpop.permute.xlu0 %60
  %64 = vset.pattern.permute.xlu0 0
  %65 = vperm.xlu0 %64, %v31
  %v66 = vpop.permute.xlu0 %65
  %vm68 = vcmask 195584
  %v70 = vsel %vm68, %v32, 0
  %v73 = vsel %vm68, %v33, 0
  %v76 = vsel %vm68, %v34, 0
  %v79 = vsel %vm68, %v35, 0
  %v82 = vsel %vm68, %v36, 0
  %v85 = vsel %vm68, %v37, 0
  %87 = vmatprep.subr.mxu0 0.0
  %88 = vmatpush1.msra.mxu0 %v23
  %89 = vmatprep.subr.mxu0 0.0
  %90 = vmatpush1.msra.mxu0 %v24
  %91 = vmatprep.subr.mxu0 0.0
  %92 = vmatpush1.msra.mxu0 %v25
  %93 = vmatprep.subr.mxu0 0.0
  %94 = vmatpush1.msra.mxu0 0.0
  %95 = vmatprep.subr.mxu0 0.0
  %96 = vmatpush1.msra.mxu0 0.0
  %97 = vmatprep.subr.mxu0 0.0
  %98 = vmatpush1.msra.mxu0 0.0
  %99 = vmatprep.subr.mxu0 0.0
  %100 = vmatpush1.msra.mxu0 0.0
  %101 = vmatprep.subr.mxu0 0.0
  %102 = vmatpush1.msra.mxu0 0.0
  %103 = vmatprep.subr.mxu0 0.0
  %104 = vmatpush1.msra.mxu0 0.0
  %105 = vmatprep.subr.mxu0 0.0
  %106 = vmatpush1.msra.mxu0 0.0
  %107 = vmatprep.subr.mxu0 0.0
  %108 = vmatpush1.msra.mxu0 0.0
  %109 = vmatprep.subr.mxu0 0.0
  %110 = vmatpush1.msra.mxu0 0.0
  %111 = vmatprep.subr.mxu0 0.0
  %112 = vmatpush1.msra.mxu0 0.0
  %113 = vmatprep.subr.mxu0 0.0
  %114 = vmatpush1.msra.mxu0 0.0
  %115 = vmatprep.subr.mxu0 0.0
  %116 = vmatpush1.msra.mxu0 0.0
  %117 = vmatprep.subr.mxu0 0.0
  %118 = vmatpush1.msra.mxu0 0.0
  %119 = vmatprep.subr.mxu0 0.0
  %120 = vmatpush1.msra.mxu0 0.0
  %121 = vmatprep.subr.mxu0 0.0
  %122 = vmatpush1.msra.mxu0 0.0
  %123 = vmatprep.subr.mxu0 0.0
  %124 = vmatpush1.msra.mxu0 0.0
  %125 = vmatprep.subr.mxu0 0.0
  %126 = vmatpush1.msra.mxu0 0.0
  %127 = vmatprep.subr.mxu0 0.0
  %128 = vmatpush1.msra.mxu0 0.0
  %129 = vmatprep.subr.mxu0 0.0
  %130 = vmatpush1.msra.mxu0 0.0
  %131 = vmatprep.subr.mxu0 0.0
  %132 = vmatpush1.msra.mxu0 0.0
  %133 = vmatprep.subr.mxu0 0.0
  %134 = vmatpush1.msra.mxu0 0.0
  %135 = vmatprep.subr.mxu0 0.0
  %136 = vmatpush1.msra.mxu0 0.0
  %137 = vmatprep.subr.mxu0 0.0
  %138 = vmatpush1.msra.mxu0 0.0
  %139 = vmatprep.subr.mxu0 0.0
  %140 = vmatpush1.msra.mxu0 0.0
  %141 = vmatprep.subr.mxu0 0.0
  %142 = vmatpush1.msra.mxu0 0.0
  %143 = vmatprep.subr.mxu0 0.0
  %144 = vmatpush1.msra.mxu0 0.0
  %145 = vmatprep.subr.mxu0 0.0
  %146 = vmatpush1.msra.mxu0 0.0
  %147 = vmatprep.subr.mxu0 0.0
  %148 = vmatpush1.msra.mxu0 0.0
  %149 = vmatprep.subr.mxu0 0.0
  %150 = vmatpush1.msra.mxu0 0.0
  %151 = vmatprep.mubr.f32.mxu0 0.0
  %152 = vmatmul.mubr.f32.gmra.mrb[0].mxu0 %v70
  %v153 = vpop.f32.mrb[0].mxu0
  %v154 = vadd.f32 %v41, %v153
  %v155 = vpop.f32.mrb[0].mxu0
  %156 = vmatprep.mubr.f32.mxu0 0.0
  %157 = vmatmul.mubr.f32.gmra.mrb[0].mxu0 %v73
  %v158 = vpop.f32.mrb[0].mxu0
  %v159 = vadd.f32 %v46, %v158
  %v160 = vpop.f32.mrb[0].mxu0
  %161 = vmatprep.mubr.f32.mxu0 0.0
  %162 = vmatmul.mubr.f32.gmra.mrb[0].mxu0 %v76
  %v163 = vpop.f32.mrb[0].mxu0
  %v164 = vadd.f32 %v51, %v163
  %v165 = vpop.f32.mrb[0].mxu0
  %166 = vmatprep.mubr.f32.mxu0 0.0
  %167 = vmatmul.mubr.f32.gmra.mrb[0].mxu0 %v79
  %v168 = vpop.f32.mrb[0].mxu0
  %v169 = vadd.f32 %v56, %v168
  %v170 = vpop.f32.mrb[0].mxu0
  %171 = vmatprep.mubr.f32.mxu0 0.0
  %172 = vmatmul.mubr.f32.gmra.mrb[0].mxu0 %v82
  %v173 = vpop.f32.mrb[0].mxu0
  %v174 = vadd.f32 %v61, %v173
  %v175 = vpop.f32.mrb[0].mxu0
  %176 = vmatprep.mubr.f32.mxu0 0.0
  %177 = vmatmul.mubr.f32.gmra.mrb[0].mxu0 %v85
  %v178 = vpop.f32.mrb[0].mxu0
  %v179 = vadd.f32 %v66, %v178
  %v180 = vpop.f32.mrb[0].mxu0
  %181 = vdwg.mxu0
  %v182 = vmax.f32 %v154, 0.0
  %v183 = vmax.f32 %v159, 0.0
  %v184 = vmax.f32 %v164, 0.0
  %v185 = vmax.f32 %v169, 0.0
  %v186 = vmax.f32 %v174, 0.0
  %v187 = vmax.f32 %v179, 0.0
  %v188 = vld [vmem:[%s2] sm:$0xff]
  %v189 = vld [vmem:[%s2 + $0x8] sm:$0xff]
  %v190 = vld [vmem:[%s2 + $0x10] sm:$0xff]
  %191 = vset.pattern.permute.xlu0 1
  %192 = vperm.xlu0 %191, %v26
  %v193 = vpop.permute.xlu0 %192
  %195 = vset.pattern.permute.xlu0 1
  %196 = vperm.xlu0 %195, %v27
  %v197 = vpop.permute.xlu0 %196
  %199 = vset.pattern.permute.xlu0 1
  %200 = vperm.xlu0 %199, %v28
  %v201 = vpop.permute.xlu0 %200
  %vm203 = vcmask 392192
  %v205 = vsel %vm203, %v188, 0
  %v208 = vsel %vm203, %v189, 0
  %v211 = vsel %vm203, %v190, 0
  %213 = vmatprep.subr.mxu0 0.0
  %214 = vmatpush1.msra.mxu0 %v182
  %215 = vmatprep.subr.mxu0 0.0
  %216 = vmatpush1.msra.mxu0 %v183
  %217 = vmatprep.subr.mxu0 0.0
  %218 = vmatpush1.msra.mxu0 %v184
  %219 = vmatprep.subr.mxu0 0.0
  %220 = vmatpush1.msra.mxu0 %v185
  %221 = vmatprep.subr.mxu0 0.0
  %222 = vmatpush1.msra.mxu0 %v186
  %223 = vmatprep.subr.mxu0 0.0
  %224 = vmatpush1.msra.mxu0 %v187
  %225 = vmatprep.subr.mxu0 0.0
  %226 = vmatpush1.msra.mxu0 0.0
  %227 = vmatprep.subr.mxu0 0.0
  %228 = vmatpush1.msra.mxu0 0.0
  %229 = vmatprep.subr.mxu0 0.0
  %230 = vmatpush1.msra.mxu0 0.0
  %231 = vmatprep.subr.mxu0 0.0
  %232 = vmatpush1.msra.mxu0 0.0
  %233 = vmatprep.subr.mxu0 0.0
  %234 = vmatpush1.msra.mxu0 0.0
  %235 = vmatprep.subr.mxu0 0.0
  %236 = vmatpush1.msra.mxu0 0.0
  %237 = vmatprep.subr.mxu0 0.0
  %238 = vmatpush1.msra.mxu0 0.0
  %239 = vmatprep.subr.mxu0 0.0
  %240 = vmatpush1.msra.mxu0 0.0
  %241 = vmatprep.subr.mxu0 0.0
  %242 = vmatpush1.msra.mxu0 0.0
  %243 = vmatprep.subr.mxu0 0.0
  %244 = vmatpush1.msra.mxu0 0.0
  %245 = vmatprep.subr.mxu0 0.0
  %246 = vmatpush1.msra.mxu0 0.0
  %247 = vmatprep.subr.mxu0 0.0
  %248 = vmatpush1.msra.mxu0 0.0
  %249 = vmatprep.subr.mxu0 0.0
  %250 = vmatpush1.msra.mxu0 0.0
  %251 = vmatprep.subr.mxu0 0.0
  %252 = vmatpush1.msra.mxu0 0.0
  %253 = vmatprep.subr.mxu0 0.0
  %254 = vmatpush1.msra.mxu0 0.0
  %255 = vmatprep.subr.mxu0 0.0
  %256 = vmatpush1.msra.mxu0 0.0
  %257 = vmatprep.subr.mxu0 0.0
  %258 = vmatpush1.msra.mxu0 0.0
  %259 = vmatprep.subr.mxu0 0.0
  %260 = vmatpush1.msra.mxu0 0.0
  %261 = vmatprep.subr.mxu0 0.0
  %262 = vmatpush1.msra.mxu0 0.0
  %263 = vmatprep.subr.mxu0 0.0
  %264 = vmatpush1.msra.mxu0 0.0
  %265 = vmatprep.subr.mxu0 0.0
  %266 = vmatpush1.msra.mxu0 0.0
  %267 = vmatprep.subr.mxu0 0.0
  %268 = vmatpush1.msra.mxu0 0.0
  %269 = vmatprep.subr.mxu0 0.0
  %270 = vmatpush1.msra.mxu0 0.0
  %271 = vmatprep.subr.mxu0 0.0
  %272 = vmatpush1.msra.mxu0 0.0
  %273 = vmatprep.subr.mxu0 0.0
  %274 = vmatpush1.msra.mxu0 0.0
  %275 = vmatprep.subr.mxu0 0.0
  %276 = vmatpush1.msra.mxu0 0.0
  %277 = vmatprep.mubr.f32.mxu0 0.0
  %278 = vmatmul.mubr.f32.gmra.mrb[0].mxu0 %v205
  %v279 = vpop.f32.mrb[0].mxu0
  %v280 = vadd.f32 %v193, %v279
  %v281 = vpop.f32.mrb[0].mxu0
  %282 = vmatprep.mubr.f32.mxu0 0.0
  %283 = vmatmul.mubr.f32.gmra.mrb[0].mxu0 %v208
  %v284 = vpop.f32.mrb[0].mxu0
  %v285 = vadd.f32 %v197, %v284
  %v286 = vpop.f32.mrb[0].mxu0
  %287 = vmatprep.mubr.f32.mxu0 0.0
  %288 = vmatmul.mubr.f32.gmra.mrb[0].mxu0 %v211
  %v289 = vpop.f32.mrb[0].mxu0
  %v290 = vadd.f32 %v201, %v289
  %v291 = vpop.f32.mrb[0].mxu0
  %292 = vdwg.mxu0
  %v293 = vld [vmem:[%s3] sm:$0xff]
  %294 = vset.pattern.permute.xlu0 2
  %295 = vperm.xlu0 %294, %v26
  %v296 = vpop.permute.xlu0 %295
  %v299 = vsel %vm68, %v293, 0
  %301 = vmatprep.subr.mxu0 0.0
  %302 = vmatpush1.msra.mxu0 %v280
  %303 = vmatprep.subr.mxu0 0.0
  %304 = vmatpush1.msra.mxu0 %v285
  %305 = vmatprep.subr.mxu0 0.0
  %306 = vmatpush1.msra.mxu0 %v290
  %307 = vmatprep.subr.mxu0 0.0
  %308 = vmatpush1.msra.mxu0 0.0
  %309 = vmatprep.subr.mxu0 0.0
  %310 = vmatpush1.msra.mxu0 0.0
  %311 = vmatprep.subr.mxu0 0.0
  %312 = vmatpush1.msra.mxu0 0.0
  %313 = vmatprep.subr.mxu0 0.0
  %314 = vmatpush1.msra.mxu0 0.0
  %315 = vmatprep.subr.mxu0 0.0
  %316 = vmatpush1.msra.mxu0 0.0
  %317 = vmatprep.subr.mxu0 0.0
  %318 = vmatpush1.msra.mxu0 0.0
  %319 = vmatprep.subr.mxu0 0.0
  %320 = vmatpush1.msra.mxu0 0.0
  %321 = vmatprep.subr.mxu0 0.0
  %322 = vmatpush1.msra.mxu0 0.0
  %323 = vmatprep.subr.mxu0 0.0
  %324 = vmatpush1.msra.mxu0 0.0
  %325 = vmatprep.subr.mxu0 0.0
  %326 = vmatpush1.msra.mxu0 0.0
  %327 = vmatprep.subr.mxu0 0.0
  %328 = vmatpush1.msra.mxu0 0.0
  %329 = vmatprep.subr.mxu0 0.0
  %330 = vmatpush1.msra.mxu0 0.0
  %331 = vmatprep.subr.mxu0 0.0
  %332 = vmatpush1.msra.mxu0 0.0
  %333 = vmatprep.subr.mxu0 0.0
  %334 = vmatpush1.msra.mxu0 0.0
  %335 = vmatprep.subr.mxu0 0.0
  %336 = vmatpush1.msra.mxu0 0.0
  %337 = vmatprep.subr.mxu0 0.0
  %338 = vmatpush1.msra.mxu0 0.0
  %339 = vmatprep.subr.mxu0 0.0
  %340 = vmatpush1.msra.mxu0 0.0
  %341 = vmatprep.subr.mxu0 0.0
  %342 = vmatpush1.msra.mxu0 0.0
  %343 = vmatprep.subr.mxu0 0.0
  %344 = vmatpush1.msra.mxu0 0.0
  %345 = vmatprep.subr.mxu0 0.0
  %346 = vmatpush1.msra.mxu0 0.0
  %347 = vmatprep.subr.mxu0 0.0
  %348 = vmatpush1.msra.mxu0 0.0
  %349 = vmatprep.subr.mxu0 0.0
  %350 = vmatpush1.msra.mxu0 0.0
  %351 = vmatprep.subr.mxu0 0.0
  %352 = vmatpush1.msra.mxu0 0.0
  %353 = vmatprep.subr.mxu0 0.0
  %354 = vmatpush1.msra.mxu0 0.0
  %355 = vmatprep.subr.mxu0 0.0
  %356 = vmatpush1.msra.mxu0 0.0
  %357 = vmatprep.subr.mxu0 0.0
  %358 = vmatpush1.msra.mxu0 0.0
  %359 = vmatprep.subr.mxu0 0.0
  %360 = vmatpush1.msra.mxu0 0.0
  %361 = vmatprep.subr.mxu0 0.0
  %362 = vmatpush1.msra.mxu0 0.0
  %363 = vmatprep.subr.mxu0 0.0
  %364 = vmatpush1.msra.mxu0 0.0
  %365 = vmatprep.mubr.f32.mxu0 0.0
  %366 = vmatmul.mubr.f32.gmra.mrb[0].mxu0 %v299
  %v367 = vpop.f32.mrb[0].mxu0
  %v368 = vadd.f32 %v296, %v367
  %v369 = vpop.f32.mrb[0].mxu0
  %370 = vdwg.mxu0
  %v371 = vmax.f32 %v368, 0.0
  %v372 = vld [vmem:[%s4] sm:$0xff]
  %v373 = vld [vmem:[%s4 + $0x8] sm:$0xff]
  %v374 = vld [vmem:[%s4 + $0x10] sm:$0xff]
  %375 = vset.pattern.permute.xlu0 3
  %376 = vperm.xlu0 %375, %v26
  %v377 = vpop.permute.xlu0 %376
  %379 = vset.pattern.permute.xlu0 3
  %380 = vperm.xlu0 %379, %v27
  %v381 = vpop.permute.xlu0 %380
  %383 = vset.pattern.permute.xlu0 3
  %384 = vperm.xlu0 %383, %v28
  %v385 = vpop.permute.xlu0 %384
  %vm387 = vcmask 64512
  %v389 = vsel %vm387, %v372, 0
  %v392 = vsel %vm387, %v373, 0
  %v395 = vsel %vm387, %v374, 0
  %397 = vmatprep.subr.mxu0 0.0
  %398 = vmatpush1.msra.mxu0 %v371
  %399 = vmatprep.subr.mxu0 0.0
  %400 = vmatpush1.msra.mxu0 0.0
  %401 = vmatprep.subr.mxu0 0.0
  %402 = vmatpush1.msra.mxu0 0.0
  %403 = vmatprep.subr.mxu0 0.0
  %404 = vmatpush1.msra.mxu0 0.0
  %405 = vmatprep.subr.mxu0 0.0
  %406 = vmatpush1.msra.mxu0 0.0
  %407 = vmatprep.subr.mxu0 0.0
  %408 = vmatpush1.msra.mxu0 0.0
  %409 = vmatprep.subr.mxu0 0.0
  %410 = vmatpush1.msra.mxu0 0.0
  %411 = vmatprep.subr.mxu0 0.0
  %412 = vmatpush1.msra.mxu0 0.0
  %413 = vmatprep.subr.mxu0 0.0
  %414 = vmatpush1.msra.mxu0 0.0
  %415 = vmatprep.subr.mxu0 0.0
  %416 = vmatpush1.msra.mxu0 0.0
  %417 = vmatprep.subr.mxu0 0.0
  %418 = vmatpush1.msra.mxu0 0.0
  %419 = vmatprep.subr.mxu0 0.0
  %420 = vmatpush1.msra.mxu0 0.0
  %421 = vmatprep.subr.mxu0 0.0
  %422 = vmatpush1.msra.mxu0 0.0
  %423 = vmatprep.subr.mxu0 0.0
  %424 = vmatpush1.msra.mxu0 0.0
  %425 = vmatprep.subr.mxu0 0.0
  %426 = vmatpush1.msra.mxu0 0.0
  %427 = vmatprep.subr.mxu0 0.0
  %428 = vmatpush1.msra.mxu0 0.0
  %429 = vmatprep.subr.mxu0 0.0
  %430 = vmatpush1.msra.mxu0 0.0
  %431 = vmatprep.subr.mxu0 0.0
  %432 = vmatpush1.msra.mxu0 0.0
  %433 = vmatprep.subr.mxu0 0.0
  %434 = vmatpush1.msra.mxu0 0.0
  %435 = vmatprep.subr.mxu0 0.0
  %436 = vmatpush1.msra.mxu0 0.0
  %437 = vmatprep.subr.mxu0 0.0
  %438 = vmatpush1.msra.mxu0 0.0
  %439 = vmatprep.subr.mxu0 0.0
  %440 = vmatpush1.msra.mxu0 0.0
  %441 = vmatprep.subr.mxu0 0.0
  %442 = vmatpush1.msra.mxu0 0.0
  %443 = vmatprep.subr.mxu0 0.0
  %444 = vmatpush1.msra.mxu0 0.0
  %445 = vmatprep.subr.mxu0 0.0
  %446 = vmatpush1.msra.mxu0 0.0
  %447 = vmatprep.subr.mxu0 0.0
  %448 = vmatpush1.msra.mxu0 0.0
  %449 = vmatprep.subr.mxu0 0.0
  %450 = vmatpush1.msra.mxu0 0.0
  %451 = vmatprep.subr.mxu0 0.0
  %452 = vmatpush1.msra.mxu0 0.0
  %453 = vmatprep.subr.mxu0 0.0
  %454 = vmatpush1.msra.mxu0 0.0
  %455 = vmatprep.subr.mxu0 0.0
  %456 = vmatpush1.msra.mxu0 0.0
  %457 = vmatprep.subr.mxu0 0.0
  %458 = vmatpush1.msra.mxu0 0.0
  %459 = vmatprep.subr.mxu0 0.0
  %460 = vmatpush1.msra.mxu0 0.0
  %461 = vmatprep.mubr.f32.mxu0 0.0
  %462 = vmatmul.mubr.f32.gmra.mrb[0].mxu0 %v389
  %v463 = vpop.f32.mrb[0].mxu0
  %v464 = vadd.f32 %v377, %v463
  %v465 = vpop.f32.mrb[0].mxu0
  %466 = vmatprep.mubr.f32.mxu0 0.0
  %467 = vmatmul.mubr.f32.gmra.mrb[0].mxu0 %v392
  %v468 = vpop.f32.mrb[0].mxu0
  %v469 = vadd.f32 %v381, %v468
  %v470 = vpop.f32.mrb[0].mxu0
  %471 = vmatprep.mubr.f32.mxu0 0.0
  %472 = vmatmul.mubr.f32.gmra.mrb[0].mxu0 %v395
  %v473 = vpop.f32.mrb[0].mxu0
  %v474 = vadd.f32 %v385, %v473
  %v475 = vpop.f32.mrb[0].mxu0
  %476 = vdwg.mxu0
  %v477 = vxor.u32 %v464, 2147483648
  %v478 = vxor.u32 %v469, 2147483648
  %v479 = vxor.u32 %v474, 2147483648
  %v480 = vmul.f32 %v477, 1.442695
  %v481 = vpow.pop %v480
  %v482 = vmul.f32 %v478, 1.442695
  %v483 = vpow.pop %v482
  %v484 = vmul.f32 %v479, 1.442695
  %v485 = vpow.pop %v484
  %v486 = vadd.f32 %v481, 1.0
  %v487 = vadd.f32 %v483, 1.0
  %v488 = vadd.f32 %v485, 1.0
  %v489 = vrcp.pop %v486
  %v490 = vmul.f32 1.0, %v489
  %v491 = vrcp.pop %v487
  %v492 = vmul.f32 1.0, %v491
  %v493 = vrcp.pop %v488
  %v494 = vmul.f32 1.0, %v493
  %495 = vst.msk [vmem:[%s6] sm:$0xff] %vm387, %v490
  %496 = vst.msk [vmem:[%s6 + $0x8] sm:$0xff] %vm387, %v492
  %497 = vst.msk [vmem:[%s6 + $0x10] sm:$0xff] %vm387, %v494
  // Predicated region
  $region26: #{tpu_custom_call.1} parent=0 // pred_check
    _
  $region27: #{tpu_custom_call.1} parent=0 // pred_check_branch
    %499 = sbr.rel (0) target = $region29
  $region28: #{tpu_custom_call.1} parent=0 // pred_region
    _
  $region29: #{tpu_custom_call.1} parent=0 // pred_fallthru
    _
  // Predicated region
  $region30: #{tpu_custom_call.1} parent=0 // pred_check
    _
  $region31: #{tpu_custom_call.1} parent=0 // pred_check_branch
    %501 = sbr.rel (0) target = $region33
  $region32: #{tpu_custom_call.1} parent=0 // pred_region
    _
  $region33: #{tpu_custom_call.1} parent=0 // pred_fallthru
    _

</llo_original>
